<compile_context>
chip_gen: v7x
topology: tpu7x:2x2x1
jax: 0.10.0
libtpu: 0.0.40
codegen_flags: <defaults>
</compile_context>

<pallas_src>
import math

import jax
import jax.numpy as jnp
from jax.experimental import pallas as pl
from jax.experimental.pallas import tpu as pltpu

# ---- hyperparameters ---------------------------------------------------
INPUT_SIZE = 32
HIDDEN_SIZES = [64, 64]
OUTPUT_SIZE = 16

BATCH = 512  # demo batch (exercises a 2-step "parallel" grid -> both v7x TCs)


# ---- Pallas kernel: fused 3-layer MLP (transposed / lane-dense) ---------
def mlp_kernel(x_ref, w1_ref, b1_ref, w2_ref, b2_ref, w3_ref, b3_ref, o_ref):
    # x_ref: (INPUT_SIZE, TB) bf16   -- batch on lanes
    # wN_ref: (out, in) bf16 (torch Linear layout), bN_ref: (out, 1) f32
    # All matmuls accumulate in f32; elementwise/transcendental math is f32.

    # Layer 1: Linear + ReLU  (activations[0])
    h = jnp.dot(w1_ref[...], x_ref[...],
                preferred_element_type=jnp.float32)          # (64, TB) f32
    h = jnp.maximum(h + b1_ref[...], 0.0)

    # Layer 2: Linear + Tanh  (activations[1]) -- re-narrow to bf16 so the MXU
    # gets native bf16 operands.
    h = jnp.dot(w2_ref[...], h.astype(jnp.bfloat16),
                preferred_element_type=jnp.float32)          # (64, TB) f32
    h = jnp.tanh(h + b2_ref[...])

    # Output layer: Linear (no activation). (16, TB) tile, TB lanes -> one
    # unmasked lane-dense store.
    out = jnp.dot(w3_ref[...], h.astype(jnp.bfloat16),
                  preferred_element_type=jnp.float32)        # (16, TB) f32
    o_ref[...] = (out + b3_ref[...]).astype(o_ref.dtype)


def _pick_batch_tile(B, requested):
    if requested is not None:
        return min(requested, B)
    if B % 256 != 0:
        # Irregular batch: one full-array step (block == full dims is always
        # legal and avoids padded garbage rows in the last block).
        return B
    # >= 2 grid steps so v7x's two TensorCores both get work (grid axis is
    # "parallel"); keep tiles >= 256 lanes to amortize per-step overhead on
    # v5e/v6e; cap at 2048 lanes so VMEM use stays tiny even on v7x.
    return max(256, min(2048, ((B // 2) // 128) * 128))


def mlp_forward(x, params, *, batch_tile=None, transposed_output=False):
    """x: (B, INPUT_SIZE). Returns (B, OUTPUT_SIZE) bf16 (or (OUTPUT_SIZE, B)
    if transposed_output=True)."""
    (w1, b1), (w2, b2), (w3, b3) = params
    B = x.shape[0]
    tb = _pick_batch_tile(B, batch_tile)
    num_steps = pl.cdiv(B, tb)

    # Lane-dense input: batch on lanes.
    x_t = x.T.astype(jnp.bfloat16)                       # (INPUT_SIZE, B)

    # Weights / biases: constant block index -> stay resident in VMEM.
    def resident(a):
        return pl.BlockSpec(a.shape, lambda *_: (0,) * a.ndim)

    # Streamed x: deepen pipelining only for long grids (tiny, latency-bound
    # DMAs); irrelevant at <=2 steps.
    x_spec_kwargs = {}
    if num_steps >= 4:
        x_spec_kwargs["pipeline_mode"] = pl.Buffered(3)
    x_spec = pl.BlockSpec((INPUT_SIZE, tb), lambda i: (0, i), **x_spec_kwargs)

    flops = 2 * B * (INPUT_SIZE * HIDDEN_SIZES[0]
                     + HIDDEN_SIZES[0] * HIDDEN_SIZES[1]
                     + HIDDEN_SIZES[1] * OUTPUT_SIZE)
    bytes_accessed = (
        B * INPUT_SIZE * 2                      # bf16 x streamed in
        + B * OUTPUT_SIZE * 2                   # bf16 out streamed back
        + sum(int(a.size) * a.dtype.itemsize
              for a in (w1, b1, w2, b2, w3, b3)))
    cost = pl.CostEstimate(flops=flops,
                           transcendentals=B * HIDDEN_SIZES[1],  # tanh
                           bytes_accessed=bytes_accessed)

    out_t = pl.pallas_call(
        mlp_kernel,
        out_shape=jax.ShapeDtypeStruct((OUTPUT_SIZE, B), jnp.bfloat16),
        grid=(num_steps,),
        in_specs=[
            x_spec,
            resident(w1), resident(b1),
            resident(w2), resident(b2),
            resident(w3), resident(b3),
        ],
        out_specs=pl.BlockSpec((OUTPUT_SIZE, tb), lambda i: (0, i)),
        compiler_params=pltpu.CompilerParams(
            dimension_semantics=("parallel",),   # v7x: shard batch over 2 TCs
        ),
        cost_estimate=cost,
    )(x_t, w1, b1, w2, b2, w3, b3)

    if transposed_output:
        return out_t                              # (OUTPUT_SIZE, B)
    return out_t.T                                # (B, OUTPUT_SIZE)


# ---- deterministic parameter init (matches torch Linear's U(-k, k)) -----
def init_linear(key, fan_in, fan_out):
    kw, kb = jax.random.split(key)
    bound = 1.0 / math.sqrt(fan_in)
    # torch Linear layout: weight (out_features, in_features); bias (out, 1)
    # so it broadcasts along the lane (batch) axis in the kernel.
    w = jax.random.uniform(kw, (fan_out, fan_in), jnp.float32, -bound, bound)
    b = jax.random.uniform(kb, (fan_out, 1), jnp.float32, -bound, bound)
    return w.astype(jnp.bfloat16), b   # bf16 weight storage, f32 biases


def make_params(key):
    k1, k2, k3 = jax.random.split(key, 3)
    p1 = init_linear(k1, INPUT_SIZE, HIDDEN_SIZES[0])
    p2 = init_linear(k2, HIDDEN_SIZES[0], HIDDEN_SIZES[1])
    p3 = init_linear(k3, HIDDEN_SIZES[1], OUTPUT_SIZE)
    return (p1, p2, p3)


# ---- pure-JAX reference (mirrors the kernel's dtype policy) --------------
def mlp_ref(x, params):
    (w1, b1), (w2, b2), (w3, b3) = params
    f32 = jnp.float32
    h = jnp.dot(x.astype(jnp.bfloat16), w1.T,
                preferred_element_type=f32) + b1[:, 0]
    h = jnp.maximum(h, 0.0)
    h = jnp.dot(h.astype(jnp.bfloat16), w2.T,
                preferred_element_type=f32) + b2[:, 0]
    h = jnp.tanh(h)
    return jnp.dot(h.astype(jnp.bfloat16), w3.T,
                   preferred_element_type=f32) + b3[:, 0]


if __name__ == "__main__":
    key = jax.random.PRNGKey(0)
    kx, kp = jax.random.split(key)
    x = jax.random.normal(kx, (BATCH, INPUT_SIZE), jnp.float32).astype(
        jnp.bfloat16)
    params = make_params(kp)

    out = mlp_forward(x, params)
    out = jax.block_until_ready(out)

    ref = mlp_ref(x, params)
    assert out.shape == (BATCH, OUTPUT_SIZE)
    # Kernel output is bf16-rounded; reference keeps the final sum in f32, so
    # allow one bf16 ulp of slack.
    err = float(jnp.max(jnp.abs(out.astype(jnp.float32) - ref)))
    assert jnp.allclose(out.astype(jnp.float32), ref, atol=2e-2, rtol=2e-2), err

    print("KERNEL_OK")
</pallas_src>

<mosaic_0001>
module attributes {stable_mosaic.version = 11 : i64} {
  func.func @mlp_kernel(%arg0: i32, %arg1: memref<32x256xbf16, #tpu.memory_space<vmem>>, %arg2: memref<64x32xbf16, #tpu.memory_space<vmem>>, %arg3: memref<64x1xf32, #tpu.memory_space<vmem>>, %arg4: memref<64x64xbf16, #tpu.memory_space<vmem>>, %arg5: memref<64x1xf32, #tpu.memory_space<vmem>>, %arg6: memref<16x64xbf16, #tpu.memory_space<vmem>>, %arg7: memref<16x1xf32, #tpu.memory_space<vmem>>, %arg8: memref<16x256xbf16, #tpu.memory_space<vmem>>) attributes {dimension_semantics = [#tpu.dimension_semantics<parallel>], iteration_bounds = array<i64: 2>, scalar_prefetch = 0 : i64, scratch_operands = 0 : i64, tpu.core_type = #tpu.core_type<tc>, window_params = [{transform_indices = @transform_0, window_bounds = array<i64: 32, 256>}, {pipeline_mode = #tpu.pipeline_mode<synchronous>, transform_indices = @transform_1, window_bounds = array<i64: 64, 32>}, {pipeline_mode = #tpu.pipeline_mode<synchronous>, transform_indices = @transform_2, window_bounds = array<i64: 64, 1>}, {pipeline_mode = #tpu.pipeline_mode<synchronous>, transform_indices = @transform_3, window_bounds = array<i64: 64, 64>}, {pipeline_mode = #tpu.pipeline_mode<synchronous>, transform_indices = @transform_4, window_bounds = array<i64: 64, 1>}, {pipeline_mode = #tpu.pipeline_mode<synchronous>, transform_indices = @transform_5, window_bounds = array<i64: 16, 64>}, {pipeline_mode = #tpu.pipeline_mode<synchronous>, transform_indices = @transform_6, window_bounds = array<i64: 16, 1>}, {transform_indices = @transform_7, window_bounds = array<i64: 16, 256>}]} {
    %c0 = arith.constant 0 : index
    %c0_0 = arith.constant 0 : index
    %0 = vector.load %arg2[%c0, %c0_0] : memref<64x32xbf16, #tpu.memory_space<vmem>>, vector<64x32xbf16>
    %c0_1 = arith.constant 0 : index
    %c0_2 = arith.constant 0 : index
    %1 = vector.load %arg1[%c0_1, %c0_2] : memref<32x256xbf16, #tpu.memory_space<vmem>>, vector<32x256xbf16>
    %cst = arith.constant dense<0.000000e+00> : vector<64x256xf32>
    %2 = tpu.matmul %0, %1, %cst {dimension_numbers = #tpu.dot_dimension_numbers<[1], [0], [0], [1], [0, 0, 1, 1], [], []>} : vector<64x32xbf16>, vector<32x256xbf16>, vector<64x256xf32> -> vector<64x256xf32>
    %c0_3 = arith.constant 0 : index
    %c0_4 = arith.constant 0 : index
    %3 = vector.load %arg3[%c0_3, %c0_4] : memref<64x1xf32, #tpu.memory_space<vmem>>, vector<64x1xf32>
    %4 = vector.broadcast %3 : vector<64x1xf32> to vector<64x256xf32>
    %5 = arith.addf %2, %4 : vector<64x256xf32>
    %cst_5 = arith.constant 0.000000e+00 : f32
    %6 = vector.broadcast %cst_5 : f32 to vector<64x256xf32>
    %7 = arith.maximumf %5, %6 : vector<64x256xf32>
    %c0_6 = arith.constant 0 : index
    %c0_7 = arith.constant 0 : index
    %8 = vector.load %arg4[%c0_6, %c0_7] : memref<64x64xbf16, #tpu.memory_space<vmem>>, vector<64x64xbf16>
    %9 = arith.truncf %7 : vector<64x256xf32> to vector<64x256xbf16>
    %cst_8 = arith.constant dense<0.000000e+00> : vector<64x256xf32>
    %10 = tpu.matmul %8, %9, %cst_8 {dimension_numbers = #tpu.dot_dimension_numbers<[1], [0], [0], [1], [0, 0, 1, 1], [], []>} : vector<64x64xbf16>, vector<64x256xbf16>, vector<64x256xf32> -> vector<64x256xf32>
    %c0_9 = arith.constant 0 : index
    %c0_10 = arith.constant 0 : index
    %11 = vector.load %arg5[%c0_9, %c0_10] : memref<64x1xf32, #tpu.memory_space<vmem>>, vector<64x1xf32>
    %12 = vector.broadcast %11 : vector<64x1xf32> to vector<64x256xf32>
    %13 = arith.addf %10, %12 : vector<64x256xf32>
    %14 = math.tanh %13 : vector<64x256xf32>
    %c0_11 = arith.constant 0 : index
    %c0_12 = arith.constant 0 : index
    %15 = vector.load %arg6[%c0_11, %c0_12] : memref<16x64xbf16, #tpu.memory_space<vmem>>, vector<16x64xbf16>
    %16 = arith.truncf %14 : vector<64x256xf32> to vector<64x256xbf16>
    %cst_13 = arith.constant dense<0.000000e+00> : vector<16x256xf32>
    %17 = tpu.matmul %15, %16, %cst_13 {dimension_numbers = #tpu.dot_dimension_numbers<[1], [0], [0], [1], [0, 0, 1, 1], [], []>} : vector<16x64xbf16>, vector<64x256xbf16>, vector<16x256xf32> -> vector<16x256xf32>
    %c0_14 = arith.constant 0 : index
    %c0_15 = arith.constant 0 : index
    %18 = vector.load %arg7[%c0_14, %c0_15] : memref<16x1xf32, #tpu.memory_space<vmem>>, vector<16x1xf32>
    %19 = vector.broadcast %18 : vector<16x1xf32> to vector<16x256xf32>
    %20 = arith.addf %17, %19 : vector<16x256xf32>
    %21 = arith.truncf %20 : vector<16x256xf32> to vector<16x256xbf16>
    %c0_16 = arith.constant 0 : index
    %c0_17 = arith.constant 0 : index
    %22 = vector.load %arg8[%c0_16, %c0_17] : memref<16x256xbf16, #tpu.memory_space<vmem>>, vector<16x256xbf16>
    tpu.vector_store %arg8[%c0_16, %c0_17], %21 {strides = array<i32>} : memref<16x256xbf16, #tpu.memory_space<vmem>>, vector<16x256xbf16>,
    return
  }
  func.func @transform_0(%arg0: i32) -> (i32, i32) {
    %c0_i32 = arith.constant 0 : i32
    %c0_i32_0 = arith.constant 0 : i32
    return %c0_i32, %arg0 : i32, i32
  }
  func.func @transform_1(%arg0: i32) -> (i32, i32) {
    %c0_i32 = arith.constant 0 : i32
    %c0_i32_0 = arith.constant 0 : i32
    %c0_i32_1 = arith.constant 0 : i32
    return %c0_i32, %c0_i32_0 : i32, i32
  }
  func.func @transform_2(%arg0: i32) -> (i32, i32) {
    %c0_i32 = arith.constant 0 : i32
    %c0_i32_0 = arith.constant 0 : i32
    %c0_i32_1 = arith.constant 0 : i32
    return %c0_i32, %c0_i32_0 : i32, i32
  }
  func.func @transform_3(%arg0: i32) -> (i32, i32) {
    %c0_i32 = arith.constant 0 : i32
    %c0_i32_0 = arith.constant 0 : i32
    %c0_i32_1 = arith.constant 0 : i32
    return %c0_i32, %c0_i32_0 : i32, i32
  }
  func.func @transform_4(%arg0: i32) -> (i32, i32) {
    %c0_i32 = arith.constant 0 : i32
    %c0_i32_0 = arith.constant 0 : i32
    %c0_i32_1 = arith.constant 0 : i32
    return %c0_i32, %c0_i32_0 : i32, i32
  }
  func.func @transform_5(%arg0: i32) -> (i32, i32) {
    %c0_i32 = arith.constant 0 : i32
    %c0_i32_0 = arith.constant 0 : i32
    %c0_i32_1 = arith.constant 0 : i32
    return %c0_i32, %c0_i32_0 : i32, i32
  }
  func.func @transform_6(%arg0: i32) -> (i32, i32) {
    %c0_i32 = arith.constant 0 : i32
    %c0_i32_0 = arith.constant 0 : i32
    %c0_i32_1 = arith.constant 0 : i32
    return %c0_i32, %c0_i32_0 : i32, i32
  }
  func.func @transform_7(%arg0: i32) -> (i32, i32) {
    %c0_i32 = arith.constant 0 : i32
    %c0_i32_0 = arith.constant 0 : i32
    return %c0_i32, %arg0 : i32, i32
  }
}

</mosaic_0001>

<llo_original>
// kernel: tpu_custom_call.1
$region0: #{tpu_custom_call.1}
  #allocation0 [shape = 'u32[]', space=smem, size = 0x4, offset = 0x4, fixed_abs, tag = 'smem constant byte address 0x4 - core index']
  #allocation1 [shape = 'u32[144,128]{1,0:T(1,128)}', space=vmem, size = 0x12000, scoped, tag = 'internal scratch']
  %s0 = inlined_call_operand.vmem [shape: bf16[32,512], index: 0, kind: input, shape index: {}]
  %s1 = inlined_call_operand.vmem [shape: bf16[64,32], index: 1, kind: input, shape index: {}]
  %s2 = inlined_call_operand.vmem [shape: f32[64,1], index: 2, kind: input, shape index: {}]
  %s3 = inlined_call_operand.vmem [shape: bf16[64,64], index: 3, kind: input, shape index: {}]
  %s4 = inlined_call_operand.vmem [shape: f32[64,1], index: 4, kind: input, shape index: {}]
  %s5 = inlined_call_operand.vmem [shape: bf16[16,64], index: 5, kind: input, shape index: {}]
  %s6 = inlined_call_operand.vmem [shape: f32[16,1], index: 6, kind: input, shape index: {}]
  %s7 = inlined_call_operand.hbm [shape: bf16[16,512], index: 7, kind: output, shape index: {}]
  %s8 = sld [smem:[#allocation0]]
  $region99: #{tpu_custom_call.1} parent=0
    _
  %s10 = ssub.s32 1, %s8
  %s11 = scalar_select 0, %s10, %s8
  $region1: #{tpu_custom_call.1} parent=0
    #allocation2 [shape = 'u8[32768]{0}', space=vmem, size = 0x8000, scoped, tag = 'input window, operand 0']
    #allocation3 [shape = 'u8[16384]{0}', space=vmem, size = 0x4000, scoped, tag = 'output window, operand 0']
    #allocation4 [shape = 's32[2]{0}', space=sflag, size = 0x8, scoped, tag = 'scoped memory for tpu_custom_call.1']
    %12 = vsyncpa [#allocation4], 0
    %s13 = scalar_lea.sflag [#allocation4], 1
    %14 = vsyncpa %s13, 0
    loop: start=0, step=1, limit=4
    $region2: #{tpu_custom_call.1} parent=1 // loop_pre_header
      _
    $region3: #{tpu_custom_call.1} parent=1 // loop_header
      %s16 = sphi 0, %s20
      %p17 = scmp.ge.s32.totalorder %s16, 4
      %s26 = sphi 0, %s28
      %s29 = sphi 0, %s26
      %s30 = sphi 0, %s29
      %s46 = sphi 0, %s30
      %s50 = sphi 0, %s50
      %s52 = sphi 0, %s50
      %s53 = sphi 0, %s52
      %s67 = sphi 0, %s53
      %s71 = sphi 0, %s71
      %s73 = sphi 0, %s71
      %s74 = sphi 0, %s73
      %s88 = sphi 0, %s74
      %s92 = sphi 0, %s92
      %s94 = sphi 0, %s92
      %s95 = sphi 0, %s94
      %s109 = sphi 0, %s95
      %s113 = sphi 0, %s113
      %s115 = sphi 0, %s113
      %s116 = sphi 0, %s115
      %s130 = sphi 0, %s116
      %s134 = sphi 0, %s134
      %s136 = sphi 0, %s134
      %s137 = sphi 0, %s136
      %s151 = sphi 0, %s137
      %s155 = sphi 0, %s155
      %s157 = sphi 0, %s155
      %s158 = sphi 0, %s157
      %s172 = sphi 0, %s158
      %s178 = sphi 0, %s180
      %s181 = sphi 0, %s178
      %s182 = sphi 0, %s181
      %s198 = sphi 0, %s182
    $region4: #{tpu_custom_call.1} parent=1 // loop_header_branch
      %19 = sbr.rel (%p17) target = $region8
    $region5: #{tpu_custom_call.1} parent=1 // loop_body
      %s21 = ssub.s32 %s16, 1
      %s22 = ssub.s32 %s16, 2
      %s23 = sadd.s32 %s16, 1
      %s24 = ssub.s32 %s16, %s23
      %p25 = scmp.eq.s32.totalorder %s24, 0
      %s27 = sadd.s32 %s26, 1
      %s28 = scalar_select %p25, %s26, %s27
      %p31 = pneg %p25
      %p32 = scmp.eq.s32.totalorder %s16, 1
      %p33 = por %p31, %p32
      %p34 = scmp.ne.s32.totalorder %s26, %s29
      %p35 = scmp.eq.s32.totalorder %s16, 0
      %p36 = por %p34, %p35
      %p37 = scmp.ne.s32.totalorder %s26, %s29
      %p38 = scmp.eq.s32.totalorder %s21, 1
      %p39 = por %p37, %p38
      %p40 = scmp.ne.s32.totalorder %s29, %s30
      %p41 = scmp.eq.s32.totalorder %s21, 0
      %p42 = por %p40, %p41
      %p43 = scmp.ne.s32.totalorder %s29, %s30
      %p44 = scmp.eq.s32.totalorder %s22, 1
      %p45 = por %p43, %p44
      %p47 = scmp.ne.s32.totalorder %s30, %s46
      %p48 = scmp.eq.s32.totalorder %s22, 0
      %p49 = por %p47, %p48
      %s51 = sadd.s32 %s50, 1
      %p54 = scmp.eq.s32.totalorder %s16, 1
      %p55 = scmp.ne.s32.totalorder %s50, %s52
      %p56 = scmp.eq.s32.totalorder %s16, 0
      %p57 = por %p55, %p56
      %p58 = scmp.ne.s32.totalorder %s50, %s52
      %p59 = scmp.eq.s32.totalorder %s21, 1
      %p60 = por %p58, %p59
      %p61 = scmp.ne.s32.totalorder %s52, %s53
      %p62 = scmp.eq.s32.totalorder %s21, 0
      %p63 = por %p61, %p62
      %p64 = scmp.ne.s32.totalorder %s52, %s53
      %p65 = scmp.eq.s32.totalorder %s22, 1
      %p66 = por %p64, %p65
      %p68 = scmp.ne.s32.totalorder %s53, %s67
      %p69 = scmp.eq.s32.totalorder %s22, 0
      %p70 = por %p68, %p69
      %s72 = sadd.s32 %s71, 1
      %p75 = scmp.eq.s32.totalorder %s16, 1
      %p76 = scmp.ne.s32.totalorder %s71, %s73
      %p77 = scmp.eq.s32.totalorder %s16, 0
      %p78 = por %p76, %p77
      %p79 = scmp.ne.s32.totalorder %s71, %s73
      %p80 = scmp.eq.s32.totalorder %s21, 1
      %p81 = por %p79, %p80
      %p82 = scmp.ne.s32.totalorder %s73, %s74
      %p83 = scmp.eq.s32.totalorder %s21, 0
      %p84 = por %p82, %p83
      %p85 = scmp.ne.s32.totalorder %s73, %s74
      %p86 = scmp.eq.s32.totalorder %s22, 1
      %p87 = por %p85, %p86
      %p89 = scmp.ne.s32.totalorder %s74, %s88
      %p90 = scmp.eq.s32.totalorder %s22, 0
      %p91 = por %p89, %p90
      %s93 = sadd.s32 %s92, 1
      %p96 = scmp.eq.s32.totalorder %s16, 1
      %p97 = scmp.ne.s32.totalorder %s92, %s94
      %p98 = scmp.eq.s32.totalorder %s16, 0
      %p99 = por %p97, %p98
      %p100 = scmp.ne.s32.totalorder %s92, %s94
      %p101 = scmp.eq.s32.totalorder %s21, 1
      %p102 = por %p100, %p101
      %p103 = scmp.ne.s32.totalorder %s94, %s95
      %p104 = scmp.eq.s32.totalorder %s21, 0
      %p105 = por %p103, %p104
      %p106 = scmp.ne.s32.totalorder %s94, %s95
      %p107 = scmp.eq.s32.totalorder %s22, 1
      %p108 = por %p106, %p107
      %p110 = scmp.ne.s32.totalorder %s95, %s109
      %p111 = scmp.eq.s32.totalorder %s22, 0
      %p112 = por %p110, %p111
      %s114 = sadd.s32 %s113, 1
      %p117 = scmp.eq.s32.totalorder %s16, 1
      %p118 = scmp.ne.s32.totalorder %s113, %s115
      %p119 = scmp.eq.s32.totalorder %s16, 0
      %p120 = por %p118, %p119
      %p121 = scmp.ne.s32.totalorder %s113, %s115
      %p122 = scmp.eq.s32.totalorder %s21, 1
      %p123 = por %p121, %p122
      %p124 = scmp.ne.s32.totalorder %s115, %s116
      %p125 = scmp.eq.s32.totalorder %s21, 0
      %p126 = por %p124, %p125
      %p127 = scmp.ne.s32.totalorder %s115, %s116
      %p128 = scmp.eq.s32.totalorder %s22, 1
      %p129 = por %p127, %p128
      %p131 = scmp.ne.s32.totalorder %s116, %s130
      %p132 = scmp.eq.s32.totalorder %s22, 0
      %p133 = por %p131, %p132
      %s135 = sadd.s32 %s134, 1
      %p138 = scmp.eq.s32.totalorder %s16, 1
      %p139 = scmp.ne.s32.totalorder %s134, %s136
      %p140 = scmp.eq.s32.totalorder %s16, 0
      %p141 = por %p139, %p140
      %p142 = scmp.ne.s32.totalorder %s134, %s136
      %p143 = scmp.eq.s32.totalorder %s21, 1
      %p144 = por %p142, %p143
      %p145 = scmp.ne.s32.totalorder %s136, %s137
      %p146 = scmp.eq.s32.totalorder %s21, 0
      %p147 = por %p145, %p146
      %p148 = scmp.ne.s32.totalorder %s136, %s137
      %p149 = scmp.eq.s32.totalorder %s22, 1
      %p150 = por %p148, %p149
      %p152 = scmp.ne.s32.totalorder %s137, %s151
      %p153 = scmp.eq.s32.totalorder %s22, 0
      %p154 = por %p152, %p153
      %s156 = sadd.s32 %s155, 1
      %p159 = scmp.eq.s32.totalorder %s16, 1
      %p160 = scmp.ne.s32.totalorder %s155, %s157
      %p161 = scmp.eq.s32.totalorder %s16, 0
      %p162 = por %p160, %p161
      %p163 = scmp.ne.s32.totalorder %s155, %s157
      %p164 = scmp.eq.s32.totalorder %s21, 1
      %p165 = por %p163, %p164
      %p166 = scmp.ne.s32.totalorder %s157, %s158
      %p167 = scmp.eq.s32.totalorder %s21, 0
      %p168 = por %p166, %p167
      %p169 = scmp.ne.s32.totalorder %s157, %s158
      %p170 = scmp.eq.s32.totalorder %s22, 1
      %p171 = por %p169, %p170
      %p173 = scmp.ne.s32.totalorder %s158, %s172
      %p174 = scmp.eq.s32.totalorder %s22, 0
      %p175 = por %p173, %p174
      %s176 = ssub.s32 %s16, %s23
      %p177 = scmp.eq.s32.totalorder %s176, 0
      %s179 = sadd.s32 %s178, 1
      %s180 = scalar_select %p177, %s178, %s179
      %p183 = pneg %p177
      %p184 = scmp.eq.s32.totalorder %s16, 1
      %p185 = por %p183, %p184
      %p186 = scmp.ne.s32.totalorder %s178, %s181
      %p187 = scmp.eq.s32.totalorder %s16, 0
      %p188 = por %p186, %p187
      %p189 = scmp.ne.s32.totalorder %s178, %s181
      %p190 = scmp.eq.s32.totalorder %s21, 1
      %p191 = por %p189, %p190
      %p192 = scmp.ne.s32.totalorder %s181, %s182
      %p193 = scmp.eq.s32.totalorder %s21, 0
      %p194 = por %p192, %p193
      %p195 = scmp.ne.s32.totalorder %s181, %s182
      %p196 = scmp.eq.s32.totalorder %s22, 1
      %p197 = por %p195, %p196
      %p199 = scmp.ne.s32.totalorder %s182, %s198
      %p200 = scmp.eq.s32.totalorder %s22, 0
      %p201 = por %p199, %p200
      %p202 = scmp.le.s32.totalorder 1, %s16
      %p203 = scmp.lt.s32.totalorder %s16, 3
      %p204 = pnand %p202, %p203
      %p205 = pneg %p204
      // Predicated region
      $region9: #{tpu_custom_call.1} parent=5 // pred_check
        _
      $region10: #{tpu_custom_call.1} parent=5 // pred_check_branch
        %207 = sbr.rel (%p204) target = $region12
      $region11: #{tpu_custom_call.1} parent=5 // pred_region
        %s208 = ssub.s32 %s16, 1
        // Predicated region
        $region13: #{tpu_custom_call.1} parent=11 // pred_check
          %p209 = pneg %p63
        $region14: #{tpu_custom_call.1} parent=11 // pred_check_branch
          %211 = sbr.rel (%p209) target = $region16
        $region15: #{tpu_custom_call.1} parent=11 // pred_region
          _
        $region16: #{tpu_custom_call.1} parent=11 // pred_fallthru
          _
        // Predicated region
        $region17: #{tpu_custom_call.1} parent=11 // pred_check
          %p212 = pneg %p84
        $region18: #{tpu_custom_call.1} parent=11 // pred_check_branch
          %214 = sbr.rel (%p212) target = $region20
        $region19: #{tpu_custom_call.1} parent=11 // pred_region
          _
        $region20: #{tpu_custom_call.1} parent=11 // pred_fallthru
          _
        // Predicated region
        $region21: #{tpu_custom_call.1} parent=11 // pred_check
          %p215 = pneg %p105
        $region22: #{tpu_custom_call.1} parent=11 // pred_check_branch
          %217 = sbr.rel (%p215) target = $region24
        $region23: #{tpu_custom_call.1} parent=11 // pred_region
          _
        $region24: #{tpu_custom_call.1} parent=11 // pred_fallthru
          _
        // Predicated region
        $region25: #{tpu_custom_call.1} parent=11 // pred_check
          %p218 = pneg %p126
        $region26: #{tpu_custom_call.1} parent=11 // pred_check_branch
          %220 = sbr.rel (%p218) target = $region28
        $region27: #{tpu_custom_call.1} parent=11 // pred_region
          _
        $region28: #{tpu_custom_call.1} parent=11 // pred_fallthru
          _
        // Predicated region
        $region29: #{tpu_custom_call.1} parent=11 // pred_check
          %p221 = pneg %p147
        $region30: #{tpu_custom_call.1} parent=11 // pred_check_branch
          %223 = sbr.rel (%p221) target = $region32
        $region31: #{tpu_custom_call.1} parent=11 // pred_region
          _
        $region32: #{tpu_custom_call.1} parent=11 // pred_fallthru
          _
        // Predicated region
        $region33: #{tpu_custom_call.1} parent=11 // pred_check
          %p224 = pneg %p168
        $region34: #{tpu_custom_call.1} parent=11 // pred_check_branch
          %226 = sbr.rel (%p224) target = $region36
        $region35: #{tpu_custom_call.1} parent=11 // pred_region
          _
        $region36: #{tpu_custom_call.1} parent=11 // pred_fallthru
          _
      $region12: #{tpu_custom_call.1} parent=5 // pred_fallthru
        _
      %p227 = scmp.lt.s32.totalorder %s16, 2
      // Predicated region
      $region37: #{tpu_custom_call.1} parent=5 // pred_check
        %p228 = pneg %p227
      $region38: #{tpu_custom_call.1} parent=5 // pred_check_branch
        %230 = sbr.rel (%p228) target = $region40
      $region39: #{tpu_custom_call.1} parent=5 // pred_region
        // Predicated region
        $region41: #{tpu_custom_call.1} parent=39 // pred_check
          %p231 = pneg %p36
        $region42: #{tpu_custom_call.1} parent=39 // pred_check_branch
          %233 = sbr.rel (%p231) target = $region44
        $region43: #{tpu_custom_call.1} parent=39 // pred_region
          %s234 = sand.u32 %s26, 1
          %s235 = sand.u32 %s26, 1
          %s236 = smul.addr %s235, 32
          %s237 = scalar_lea.vmem [#allocation2], %s236
          %s238 = smul.u32 2, %s16
          %s239 = smul.addr %s238, 4
          %s240 = scalar_lea.vmem %s0, %s239
          // Predicated region
          $region45: #{tpu_custom_call.1} parent=43 // pred_check
            _
          $region46: #{tpu_custom_call.1} parent=43 // pred_check_branch
            %242 = sbr.rel (0) target = $region48
          $region47: #{tpu_custom_call.1} parent=43 // pred_region
            // Predicated region
            $region49: #{tpu_custom_call.1} parent=47 // pred_check
              _
            $region50: #{tpu_custom_call.1} parent=47 // pred_check_branch
              %244 = sbr.rel (0) target = $region52
            $region51: #{tpu_custom_call.1} parent=47 // pred_region
              // Predicated region
              $region64: #{tpu_custom_call.1} parent=51 // pred_check
                _
              $region65: #{tpu_custom_call.1} parent=51 // pred_check_branch
                %265 = sbr.rel (0) target = $region67
              $region66: #{tpu_custom_call.1} parent=51 // pred_region
                loop: start=0, step=1, limit=1
                $region68: #{tpu_custom_call.1} parent=66 // loop_pre_header
                  _
                $region69: #{tpu_custom_call.1} parent=66 // loop_header
                  %s267 = sphi 0, %s271
                  %p268 = scmp.ge.s32.totalorder %s267, 1
                  %s272 = sphi %s240, %s240
                  %s273 = sphi %s237, %s237
                $region70: #{tpu_custom_call.1} parent=66 // loop_header_branch
                  %270 = sbr.rel (%p268) target = $region74
                $region71: #{tpu_custom_call.1} parent=66 // loop_body
                  %v274 = vld [vmem:[%s272] sm:$0xff]
                  %275 = vst [vmem:[%s273] sm:$0xff] %v274
                  %v276 = vld [vmem:[%s272 + $0x10] sm:$0xff]
                  %277 = vst [vmem:[%s273 + $0x8] sm:$0xff] %v276
                  %v278 = vld [vmem:[%s272 + $0x20] sm:$0xff]
                  %279 = vst [vmem:[%s273 + $0x10] sm:$0xff] %v278
                  %v280 = vld [vmem:[%s272 + $0x30] sm:$0xff]
                  %281 = vst [vmem:[%s273 + $0x18] sm:$0xff] %v280
                $region72: #{tpu_custom_call.1} parent=66 // loop_footer
                  %s271 = sadd.s32 1, %s267
                $region73: #{tpu_custom_call.1} parent=66 // loop_footer_branch
                  %266 = sbr.rel target = $region69
                $region74: #{tpu_custom_call.1} parent=66 // loop_exit
                  _
              $region67: #{tpu_custom_call.1} parent=51 // pred_fallthru
                _
              // Predicated region
              $region75: #{tpu_custom_call.1} parent=51 // pred_check
                _
              $region76: #{tpu_custom_call.1} parent=51 // pred_check_branch
                %283 = sbr.rel target = $region78
              $region77: #{tpu_custom_call.1} parent=51 // pred_region
                _
              $region78: #{tpu_custom_call.1} parent=51 // pred_fallthru
                _
            $region52: #{tpu_custom_call.1} parent=47 // pred_fallthru
              _
            // Predicated region
            $region53: #{tpu_custom_call.1} parent=47 // pred_check
              _
            $region54: #{tpu_custom_call.1} parent=47 // pred_check_branch
              %246 = sbr.rel target = $region56
            $region55: #{tpu_custom_call.1} parent=47 // pred_region
              loop: start=0, step=1, limit=1
              $region57: #{tpu_custom_call.1} parent=55 // loop_pre_header
                _
              $region58: #{tpu_custom_call.1} parent=55 // loop_header
                %s249 = sphi 0, %s253
                %p250 = scmp.ge.s32.totalorder %s249, 1
                %s254 = sphi %s240, %s240
                %s255 = sphi %s237, %s237
              $region59: #{tpu_custom_call.1} parent=55 // loop_header_branch
                %252 = sbr.rel (%p250) target = $region63
              $region60: #{tpu_custom_call.1} parent=55 // loop_body
                %v256 = vld [vmem:[%s254] sm:$0xff]
                %257 = vst [vmem:[%s255] sm:$0xff] %v256
                %v258 = vld [vmem:[%s254 + $0x10] sm:$0xff]
                %259 = vst [vmem:[%s255 + $0x8] sm:$0xff] %v258
                %v260 = vld [vmem:[%s254 + $0x20] sm:$0xff]
                %261 = vst [vmem:[%s255 + $0x10] sm:$0xff] %v260
                %v262 = vld [vmem:[%s254 + $0x30] sm:$0xff]
                %263 = vst [vmem:[%s255 + $0x18] sm:$0xff] %v262
              $region61: #{tpu_custom_call.1} parent=55 // loop_footer
                %s253 = sadd.s32 1, %s249
              $region62: #{tpu_custom_call.1} parent=55 // loop_footer_branch
                %248 = sbr.rel target = $region58
              $region63: #{tpu_custom_call.1} parent=55 // loop_exit
                _
            $region56: #{tpu_custom_call.1} parent=47 // pred_fallthru
              _
          $region48: #{tpu_custom_call.1} parent=43 // pred_fallthru
            _
          %284 = vnop
        $region44: #{tpu_custom_call.1} parent=39 // pred_fallthru
          _
      $region40: #{tpu_custom_call.1} parent=5 // pred_fallthru
        _
      %p285 = scmp.le.s32.totalorder 1, %s16
      %p286 = scmp.lt.s32.totalorder %s16, 3
      %p287 = pnand %p285, %p286
      %p288 = pneg %p287
      // Predicated region
      $region79: #{tpu_custom_call.1} parent=5 // pred_check
        _
      $region80: #{tpu_custom_call.1} parent=5 // pred_check_branch
        %290 = sbr.rel (%p287) target = $region82
      $region81: #{tpu_custom_call.1} parent=5 // pred_region
        %s291 = ssub.s32 %s16, 1
        %s292 = sand.u32 %s29, 1
        %s293 = sand.u32 %s29, 1
        %s294 = smul.addr %s293, 32
        %s295 = scalar_lea.vmem [#allocation2], %s294
        // Predicated region
        $region83: #{tpu_custom_call.1} parent=81 // pred_check
          %p296 = pneg %p42
        $region84: #{tpu_custom_call.1} parent=81 // pred_check_branch
          %298 = sbr.rel (%p296) target = $region86
        $region85: #{tpu_custom_call.1} parent=81 // pred_region
          _
        $region86: #{tpu_custom_call.1} parent=81 // pred_fallthru
          _
        %s299 = sand.u32 %s29, 1
        %s300 = sand.u32 %s29, 1
        %s301 = smul.addr %s300, 32
        %s302 = scalar_lea.vmem [#allocation2], %s301
        %p303 = pneg %p42
        %p304 = pneg %p39
        %p305 = pneg %p63
        %p306 = pneg %p60
        %p307 = pneg %p84
        %p308 = pneg %p81
        %p309 = pneg %p105
        %p310 = pneg %p102
        %p311 = pneg %p126
        %p312 = pneg %p123
        %p313 = pneg %p147
        %p314 = pneg %p144
        %p315 = pneg %p168
        %p316 = pneg %p165
        %p317 = pneg %p194
        %p318 = pneg %p191
        %s319 = sand.u32 %s181, 1
        %s320 = scalar_lea.sflag [#allocation4], %s319
        %s321 = sand.u32 %s181, 1
        %s322 = smul.addr %s321, 16
        %s323 = scalar_lea.vmem [#allocation3], %s322
        %s324 = smul.u32 2, %s21
        %s325 = smul.u32 2, %s21
        %v327 = vld [vmem:[%s1] sm:$0xf]
        %v328 = vld [vmem:[%s1 + $0x4] sm:$0xf]
        %v329 = vld [vmem:[%s1 + $0x8] sm:$0xf]
        %v330 = vld [vmem:[%s1 + $0xc] sm:$0xf]
        %v331 = vld [vmem:[%s1 + $0x10] sm:$0xf]
        %v332 = vld [vmem:[%s1 + $0x14] sm:$0xf]
        %v333 = vld [vmem:[%s1 + $0x18] sm:$0xf]
        %v334 = vld [vmem:[%s1 + $0x1c] sm:$0xf]
        %v335 = vld [vmem:[%s295] sm:$0xff]
        %v336 = vld [vmem:[%s295 + $0x8] sm:$0xff]
        %v337 = vld [vmem:[%s295 + $0x10] sm:$0xff]
        %v338 = vld [vmem:[%s295 + $0x18] sm:$0xff]
        %v339 = vld [vmem:[%s2] sm:$0xff]
        %v340 = vld [vmem:[%s2 + $0x8] sm:$0xff]
        %v341 = vld [vmem:[%s2 + $0x10] sm:$0xff]
        %v342 = vld [vmem:[%s2 + $0x18] sm:$0xff]
        %v343 = vld [vmem:[%s2 + $0x20] sm:$0xff]
        %v344 = vld [vmem:[%s2 + $0x28] sm:$0xff]
        %v345 = vld [vmem:[%s2 + $0x30] sm:$0xff]
        %v346 = vld [vmem:[%s2 + $0x38] sm:$0xff]
        %348 = vset.pattern.permute.xlu0 0
        %349 = vperm.xlu0 %348, %v339
        %v350 = vpop.permute.xlu0 %349
        %353 = vset.pattern.permute.xlu0 0
        %354 = vperm.xlu0 %353, %v340
        %v355 = vpop.permute.xlu0 %354
        %358 = vset.pattern.permute.xlu0 0
        %359 = vperm.xlu0 %358, %v341
        %v360 = vpop.permute.xlu0 %359
        %363 = vset.pattern.permute.xlu0 0
        %364 = vperm.xlu0 %363, %v342
        %v365 = vpop.permute.xlu0 %364
        %368 = vset.pattern.permute.xlu0 0
        %369 = vperm.xlu0 %368, %v343
        %v370 = vpop.permute.xlu0 %369
        %373 = vset.pattern.permute.xlu0 0
        %374 = vperm.xlu0 %373, %v344
        %v375 = vpop.permute.xlu0 %374
        %378 = vset.pattern.permute.xlu0 0
        %379 = vperm.xlu0 %378, %v345
        %v380 = vpop.permute.xlu0 %379
        %383 = vset.pattern.permute.xlu0 0
        %384 = vperm.xlu0 %383, %v346
        %v385 = vpop.permute.xlu0 %384
        %v395 = vunpack.c.l.b16 %v327
        %v396 = vunpack.c.l.b16 %v328
        %v397 = vunpack.c.l.b16 %v329
        %v398 = vunpack.c.l.b16 %v330
        %v399 = vunpack.c.l.b16 %v331
        %v400 = vunpack.c.l.b16 %v332
        %v401 = vunpack.c.l.b16 %v333
        %v402 = vunpack.c.l.b16 %v334
        %v403 = vpack.c.b16 %v396, %v395
        %v404 = vpack.c.b16 %v398, %v397
        %v405 = vpack.c.b16 %v400, %v399
        %v406 = vpack.c.b16 %v402, %v401
        %v411 = vunpack.c.l.b16 %v335
        %v412 = vunpack.c.h.b16 %v335
        %v413 = vunpack.c.l.b16 %v336
        %v414 = vunpack.c.h.b16 %v336
        %v415 = vunpack.c.l.b16 %v337
        %v416 = vunpack.c.h.b16 %v337
        %v417 = vunpack.c.l.b16 %v338
        %v418 = vunpack.c.h.b16 %v338
        %v419 = vpack.c.b16 %v413, %v411
        %v420 = vpack.c.b16 %v414, %v412
        %v421 = vpack.c.b16 %v417, %v415
        %v422 = vpack.c.b16 %v418, %v416
        %vm427 = vcmask 261120
        %v429 = vsel %vm427, %v403, 0
        %v432 = vsel %vm427, %v404, 0
        %v435 = vsel %vm427, %v405, 0
        %v438 = vsel %vm427, %v406, 0
        %440 = vmatprep.subr.bf16.mxu0 %v420
        %441 = vmatpush1.bf16.msra.mxu0 %v419
        %442 = vmatprep.subr.bf16.mxu0 %v422
        %443 = vmatpush1.bf16.msra.mxu0 %v421
        %444 = vmatprep.subr.bf16.mxu0 0
        %445 = vmatpush1.bf16.msra.mxu0 0
        %446 = vmatprep.subr.bf16.mxu0 0
        %447 = vmatpush1.bf16.msra.mxu0 0
        %448 = vmatprep.subr.bf16.mxu0 0
        %449 = vmatpush1.bf16.msra.mxu0 0
        %450 = vmatprep.subr.bf16.mxu0 0
        %451 = vmatpush1.bf16.msra.mxu0 0
        %452 = vmatprep.subr.bf16.mxu0 0
        %453 = vmatpush1.bf16.msra.mxu0 0
        %454 = vmatprep.subr.bf16.mxu0 0
        %455 = vmatpush1.bf16.msra.mxu0 0
        %456 = vmatprep.subr.bf16.mxu0 0
        %457 = vmatpush1.bf16.msra.mxu0 0
        %458 = vmatprep.subr.bf16.mxu0 0
        %459 = vmatpush1.bf16.msra.mxu0 0
        %460 = vmatprep.subr.bf16.mxu0 0
        %461 = vmatpush1.bf16.msra.mxu0 0
        %462 = vmatprep.subr.bf16.mxu0 0
        %463 = vmatpush1.bf16.msra.mxu0 0
        %464 = vmatprep.subr.bf16.mxu0 0
        %465 = vmatpush1.bf16.msra.mxu0 0
        %466 = vmatprep.subr.bf16.mxu0 0
        %467 = vmatpush1.bf16.msra.mxu0 0
        %468 = vmatprep.subr.bf16.mxu0 0
        %469 = vmatpush1.bf16.msra.mxu0 0
        %470 = vmatprep.subr.bf16.mxu0 0
        %471 = vmatpush1.bf16.msra.mxu0 0
        %472 = vmatprep.mubr.bf16.mxu0 0
        %473 = vmatmul.mubr.bf16.gmra.mrb[0].mxu0 %v429
        %v474 = vpop.f32.mrb[0].mxu0
        %v475 = vadd.f32 %v350, %v474
        %v476 = vpop.f32.mrb[0].mxu0
        %v477 = vadd.f32 %v350, %v476
        %v478 = vpop.f32.mrb[0].mxu0
        %v479 = vadd.f32 %v355, %v478
        %v480 = vpop.f32.mrb[0].mxu0
        %v481 = vadd.f32 %v355, %v480
        %482 = vmatprep.mubr.bf16.mxu0 0
        %483 = vmatmul.mubr.bf16.gmra.mrb[0].mxu0 %v432
        %v484 = vpop.f32.mrb[0].mxu0
        %v485 = vadd.f32 %v360, %v484
        %v486 = vpop.f32.mrb[0].mxu0
        %v487 = vadd.f32 %v360, %v486
        %v488 = vpop.f32.mrb[0].mxu0
        %v489 = vadd.f32 %v365, %v488
        %v490 = vpop.f32.mrb[0].mxu0
        %v491 = vadd.f32 %v365, %v490
        %492 = vmatprep.mubr.bf16.mxu0 0
        %493 = vmatmul.mubr.bf16.gmra.mrb[0].mxu0 %v435
        %v494 = vpop.f32.mrb[0].mxu0
        %v495 = vadd.f32 %v370, %v494
        %v496 = vpop.f32.mrb[0].mxu0
        %v497 = vadd.f32 %v370, %v496
        %v498 = vpop.f32.mrb[0].mxu0
        %v499 = vadd.f32 %v375, %v498
        %v500 = vpop.f32.mrb[0].mxu0
        %v501 = vadd.f32 %v375, %v500
        %502 = vmatprep.mubr.bf16.mxu0 0
        %503 = vmatmul.mubr.bf16.gmra.mrb[0].mxu0 %v438
        %v504 = vpop.f32.mrb[0].mxu0
        %v505 = vadd.f32 %v380, %v504
        %v506 = vpop.f32.mrb[0].mxu0
        %v507 = vadd.f32 %v380, %v506
        %v508 = vpop.f32.mrb[0].mxu0
        %v509 = vadd.f32 %v385, %v508
        %v510 = vpop.f32.mrb[0].mxu0
        %v511 = vadd.f32 %v385, %v510
        %512 = vdwg.mxu0
        %v513 = vmax.f32 %v475, 0.0
        %v514 = vmax.f32 %v477, 0.0
        %v515 = vmax.f32 %v479, 0.0
        %v516 = vmax.f32 %v481, 0.0
        %v517 = vmax.f32 %v485, 0.0
        %v518 = vmax.f32 %v487, 0.0
        %v519 = vmax.f32 %v489, 0.0
        %v520 = vmax.f32 %v491, 0.0
        %v521 = vmax.f32 %v495, 0.0
        %v522 = vmax.f32 %v497, 0.0
        %v523 = vmax.f32 %v499, 0.0
        %v524 = vmax.f32 %v501, 0.0
        %v525 = vmax.f32 %v505, 0.0
        %v526 = vmax.f32 %v507, 0.0
        %v527 = vmax.f32 %v509, 0.0
        %v528 = vmax.f32 %v511, 0.0
        %v529 = vld [vmem:[%s3] sm:$0xf]
        %v530 = vld [vmem:[%s3 + $0x4] sm:$0xf]
        %v531 = vld [vmem:[%s3 + $0x8] sm:$0xf]
        %v532 = vld [vmem:[%s3 + $0xc] sm:$0xf]
        %v533 = vld [vmem:[%s3 + $0x10] sm:$0xf]
        %v534 = vld [vmem:[%s3 + $0x14] sm:$0xf]
        %v535 = vld [vmem:[%s3 + $0x18] sm:$0xf]
        %v536 = vld [vmem:[%s3 + $0x1c] sm:$0xf]
        %v537 = vpack.c.bf16 %v515, %v513
        %v538 = vpack.c.bf16 %v516, %v514
        %v539 = vpack.c.bf16 %v519, %v517
        %v540 = vpack.c.bf16 %v520, %v518
        %v541 = vpack.c.bf16 %v523, %v521
        %v542 = vpack.c.bf16 %v524, %v522
        %v543 = vpack.c.bf16 %v527, %v525
        %v544 = vpack.c.bf16 %v528, %v526
        %v545 = vld [vmem:[%s4] sm:$0xff]
        %v546 = vld [vmem:[%s4 + $0x8] sm:$0xff]
        %v547 = vld [vmem:[%s4 + $0x10] sm:$0xff]
        %v548 = vld [vmem:[%s4 + $0x18] sm:$0xff]
        %v549 = vld [vmem:[%s4 + $0x20] sm:$0xff]
        %v550 = vld [vmem:[%s4 + $0x28] sm:$0xff]
        %v551 = vld [vmem:[%s4 + $0x30] sm:$0xff]
        %v552 = vld [vmem:[%s4 + $0x38] sm:$0xff]
        %554 = vset.pattern.permute.xlu0 0
        %555 = vperm.xlu0 %554, %v545
        %v556 = vpop.permute.xlu0 %555
        %559 = vset.pattern.permute.xlu0 0
        %560 = vperm.xlu0 %559, %v546
        %v561 = vpop.permute.xlu0 %560
        %564 = vset.pattern.permute.xlu0 0
        %565 = vperm.xlu0 %564, %v547
        %v566 = vpop.permute.xlu0 %565
        %569 = vset.pattern.permute.xlu0 0
        %570 = vperm.xlu0 %569, %v548
        %v571 = vpop.permute.xlu0 %570
        %574 = vset.pattern.permute.xlu0 0
        %575 = vperm.xlu0 %574, %v549
        %v576 = vpop.permute.xlu0 %575
        %579 = vset.pattern.permute.xlu0 0
        %580 = vperm.xlu0 %579, %v550
        %v581 = vpop.permute.xlu0 %580
        %584 = vset.pattern.permute.xlu0 0
        %585 = vperm.xlu0 %584, %v551
        %v586 = vpop.permute.xlu0 %585
        %589 = vset.pattern.permute.xlu0 0
        %590 = vperm.xlu0 %589, %v552
        %v591 = vpop.permute.xlu0 %590
        %v601 = vunpack.c.l.b16 %v529
        %v602 = vunpack.c.l.b16 %v530
        %v603 = vunpack.c.l.b16 %v531
        %v604 = vunpack.c.l.b16 %v532
        %v605 = vunpack.c.l.b16 %v533
        %v606 = vunpack.c.l.b16 %v534
        %v607 = vunpack.c.l.b16 %v535
        %v608 = vunpack.c.l.b16 %v536
        %v609 = vpack.c.b16 %v602, %v601
        %v610 = vpack.c.b16 %v604, %v603
        %v611 = vpack.c.b16 %v606, %v605
        %v612 = vpack.c.b16 %v608, %v607
        %vm613 = vcmask 523264
        %v615 = vsel %vm613, %v609, 0
        %v618 = vsel %vm613, %v610, 0
        %v621 = vsel %vm613, %v611, 0
        %v624 = vsel %vm613, %v612, 0
        %626 = vmatprep.subr.bf16.mxu0 %v538
        %627 = vmatpush1.bf16.msra.mxu0 %v537
        %628 = vmatprep.subr.bf16.mxu0 %v540
        %629 = vmatpush1.bf16.msra.mxu0 %v539
        %630 = vmatprep.subr.bf16.mxu0 %v542
        %631 = vmatpush1.bf16.msra.mxu0 %v541
        %632 = vmatprep.subr.bf16.mxu0 %v544
        %633 = vmatpush1.bf16.msra.mxu0 %v543
        %634 = vmatprep.subr.bf16.mxu0 0
        %635 = vmatpush1.bf16.msra.mxu0 0
        %636 = vmatprep.subr.bf16.mxu0 0
        %637 = vmatpush1.bf16.msra.mxu0 0
        %638 = vmatprep.subr.bf16.mxu0 0
        %639 = vmatpush1.bf16.msra.mxu0 0
        %640 = vmatprep.subr.bf16.mxu0 0
        %641 = vmatpush1.bf16.msra.mxu0 0
        %642 = vmatprep.subr.bf16.mxu0 0
        %643 = vmatpush1.bf16.msra.mxu0 0
        %644 = vmatprep.subr.bf16.mxu0 0
        %645 = vmatpush1.bf16.msra.mxu0 0
        %646 = vmatprep.subr.bf16.mxu0 0
        %647 = vmatpush1.bf16.msra.mxu0 0
        %648 = vmatprep.subr.bf16.mxu0 0
        %649 = vmatpush1.bf16.msra.mxu0 0
        %650 = vmatprep.subr.bf16.mxu0 0
        %651 = vmatpush1.bf16.msra.mxu0 0
        %652 = vmatprep.subr.bf16.mxu0 0
        %653 = vmatpush1.bf16.msra.mxu0 0
        %654 = vmatprep.subr.bf16.mxu0 0
        %655 = vmatpush1.bf16.msra.mxu0 0
        %656 = vmatprep.subr.bf16.mxu0 0
        %657 = vmatpush1.bf16.msra.mxu0 0
        %658 = vmatprep.mubr.bf16.mxu0 0
        %659 = vmatmul.mubr.bf16.gmra.mrb[0].mxu0 %v615
        %v660 = vpop.f32.mrb[0].mxu0
        %v661 = vadd.f32 %v556, %v660
        %v662 = vpop.f32.mrb[0].mxu0
        %v663 = vadd.f32 %v556, %v662
        %v664 = vpop.f32.mrb[0].mxu0
        %v665 = vadd.f32 %v561, %v664
        %v666 = vpop.f32.mrb[0].mxu0
        %v667 = vadd.f32 %v561, %v666
        %668 = vmatprep.mubr.bf16.mxu0 0
        %669 = vmatmul.mubr.bf16.gmra.mrb[0].mxu0 %v618
        %v670 = vpop.f32.mrb[0].mxu0
        %v671 = vadd.f32 %v566, %v670
        %v672 = vpop.f32.mrb[0].mxu0
        %v673 = vadd.f32 %v566, %v672
        %v674 = vpop.f32.mrb[0].mxu0
        %v675 = vadd.f32 %v571, %v674
        %v676 = vpop.f32.mrb[0].mxu0
        %v677 = vadd.f32 %v571, %v676
        %678 = vmatprep.mubr.bf16.mxu0 0
        %679 = vmatmul.mubr.bf16.gmra.mrb[0].mxu0 %v621
        %v680 = vpop.f32.mrb[0].mxu0
        %v681 = vadd.f32 %v576, %v680
        %v682 = vpop.f32.mrb[0].mxu0
        %v683 = vadd.f32 %v576, %v682
        %v684 = vpop.f32.mrb[0].mxu0
        %v685 = vadd.f32 %v581, %v684
        %v686 = vpop.f32.mrb[0].mxu0
        %v687 = vadd.f32 %v581, %v686
        %688 = vmatprep.mubr.bf16.mxu0 0
        %689 = vmatmul.mubr.bf16.gmra.mrb[0].mxu0 %v624
        %v690 = vpop.f32.mrb[0].mxu0
        %v691 = vadd.f32 %v586, %v690
        %v692 = vpop.f32.mrb[0].mxu0
        %v693 = vadd.f32 %v586, %v692
        %v694 = vpop.f32.mrb[0].mxu0
        %v695 = vadd.f32 %v591, %v694
        %v696 = vpop.f32.mrb[0].mxu0
        %v697 = vadd.f32 %v591, %v696
        %698 = vdwg.mxu0
        %v699 = vtanh.pop %v661
        %v700 = vtanh.pop %v663
        %v701 = vtanh.pop %v665
        %v702 = vtanh.pop %v667
        %v703 = vtanh.pop %v671
        %v704 = vtanh.pop %v673
        %v705 = vtanh.pop %v675
        %v706 = vtanh.pop %v677
        %v707 = vtanh.pop %v681
        %v708 = vtanh.pop %v683
        %v709 = vtanh.pop %v685
        %v710 = vtanh.pop %v687
        %v711 = vtanh.pop %v691
        %v712 = vtanh.pop %v693
        %v713 = vtanh.pop %v695
        %v714 = vtanh.pop %v697
        %v715 = vld [vmem:[%s5] sm:$0xf]
        %v716 = vld [vmem:[%s5 + $0x4] sm:$0xf]
        %v717 = vpack.c.bf16 %v701, %v699
        %v718 = vpack.c.bf16 %v702, %v700
        %v719 = vpack.c.bf16 %v705, %v703
        %v720 = vpack.c.bf16 %v706, %v704
        %v721 = vpack.c.bf16 %v709, %v707
        %v722 = vpack.c.bf16 %v710, %v708
        %v723 = vpack.c.bf16 %v713, %v711
        %v724 = vpack.c.bf16 %v714, %v712
        %v725 = vld [vmem:[%s6] sm:$0xff]
        %v726 = vld [vmem:[%s6 + $0x8] sm:$0xff]
        %728 = vset.pattern.permute.xlu0 0
        %729 = vperm.xlu0 %728, %v725
        %v730 = vpop.permute.xlu0 %729
        %733 = vset.pattern.permute.xlu0 0
        %734 = vperm.xlu0 %733, %v726
        %v735 = vpop.permute.xlu0 %734
        %v739 = vunpack.c.l.b16 %v715
        %v740 = vunpack.c.l.b16 %v716
        %v741 = vpack.c.b16 %v740, %v739
        %v743 = vsel %vm613, %v741, 0
        %745 = vmatprep.subr.bf16.mxu0 %v718
        %746 = vmatpush1.bf16.msra.mxu0 %v717
        %747 = vmatprep.subr.bf16.mxu0 %v720
        %748 = vmatpush1.bf16.msra.mxu0 %v719
        %749 = vmatprep.subr.bf16.mxu0 %v722
        %750 = vmatpush1.bf16.msra.mxu0 %v721
        %751 = vmatprep.subr.bf16.mxu0 %v724
        %752 = vmatpush1.bf16.msra.mxu0 %v723
        %753 = vmatprep.subr.bf16.mxu0 0
        %754 = vmatpush1.bf16.msra.mxu0 0
        %755 = vmatprep.subr.bf16.mxu0 0
        %756 = vmatpush1.bf16.msra.mxu0 0
        %757 = vmatprep.subr.bf16.mxu0 0
        %758 = vmatpush1.bf16.msra.mxu0 0
        %759 = vmatprep.subr.bf16.mxu0 0
        %760 = vmatpush1.bf16.msra.mxu0 0
        %761 = vmatprep.subr.bf16.mxu0 0
        %762 = vmatpush1.bf16.msra.mxu0 0
        %763 = vmatprep.subr.bf16.mxu0 0
        %764 = vmatpush1.bf16.msra.mxu0 0
        %765 = vmatprep.subr.bf16.mxu0 0
        %766 = vmatpush1.bf16.msra.mxu0 0
        %767 = vmatprep.subr.bf16.mxu0 0
        %768 = vmatpush1.bf16.msra.mxu0 0
        %769 = vmatprep.subr.bf16.mxu0 0
        %770 = vmatpush1.bf16.msra.mxu0 0
        %771 = vmatprep.subr.bf16.mxu0 0
        %772 = vmatpush1.bf16.msra.mxu0 0
        %773 = vmatprep.subr.bf16.mxu0 0
        %774 = vmatpush1.bf16.msra.mxu0 0
        %775 = vmatprep.subr.bf16.mxu0 0
        %776 = vmatpush1.bf16.msra.mxu0 0
        %777 = vmatprep.mubr.bf16.mxu0 0
        %778 = vmatmul.mubr.bf16.gmra.mrb[0].mxu0 %v743
        %v779 = vpop.f32.mrb[0].mxu0
        %v780 = vadd.f32 %v730, %v779
        %v781 = vpop.f32.mrb[0].mxu0
        %v782 = vadd.f32 %v730, %v781
        %v783 = vpop.f32.mrb[0].mxu0
        %v784 = vadd.f32 %v735, %v783
        %v785 = vpop.f32.mrb[0].mxu0
        %v786 = vadd.f32 %v735, %v785
        %787 = vdwg.mxu0
        %v788 = vpack.c.bf16 %v784, %v780
        %v789 = vpack.c.bf16 %v786, %v782
        %v792 = vunpack.c.l.b16 %v788
        %v793 = vunpack.c.l.b16 %v789
        %v794 = vunpack.c.h.b16 %v788
        %v795 = vunpack.c.h.b16 %v789
        %v796 = vpack.c.b16 %v793, %v792
        %v797 = vpack.c.b16 %v795, %v794
        %800 = vst [vmem:[%s323] sm:$0xff] %v796
        %801 = vst [vmem:[%s323 + $0x8] sm:$0xff] %v797
        %s802 = sand.u32 %s181, 1
        %s803 = scalar_lea.sflag [#allocation4], %s802
        %s804 = sand.u32 %s181, 1
        %s805 = smul.addr %s804, 16
        %s806 = scalar_lea.vmem [#allocation3], %s805
        // Predicated region
        $region87: #{tpu_custom_call.1} parent=81 // pred_check
          %p807 = pneg %p191
        $region88: #{tpu_custom_call.1} parent=81 // pred_check_branch
          %809 = sbr.rel (%p807) target = $region90
        $region89: #{tpu_custom_call.1} parent=81 // pred_region
          %s810 = smul.u32 2, %s21
          %s812 = ssub.s32 256, 256
          %813 = vsyncadd %s803, %s812
          %s814 = smul.addr %s810, 64
          %s815 = scalar_lea.hbm %s7, %s814
          %s816 = sshll.u32 %s806, 4
          %s817 = int_to_ptr.vmem [resolvable:$true] %s816
          %822 = dma.vmem_to_hbm [thread:$0]  %s817, 256, %s815, %s803, 128, 256, 8
        $region90: #{tpu_custom_call.1} parent=81 // pred_fallthru
          _
      $region82: #{tpu_custom_call.1} parent=5 // pred_fallthru
        _
      %p823 = scmp.le.s32.totalorder 2, %s16
      // Predicated region
      $region91: #{tpu_custom_call.1} parent=5 // pred_check
        %p824 = pneg %p823
      $region92: #{tpu_custom_call.1} parent=5 // pred_check_branch
        %826 = sbr.rel (%p824) target = $region94
      $region93: #{tpu_custom_call.1} parent=5 // pred_region
        %s827 = ssub.s32 %s16, 2
        // Predicated region
        $region95: #{tpu_custom_call.1} parent=93 // pred_check
          %p828 = pneg %p197
        $region96: #{tpu_custom_call.1} parent=93 // pred_check_branch
          %830 = sbr.rel (%p828) target = $region98
        $region97: #{tpu_custom_call.1} parent=93 // pred_region
          %s831 = sand.u32 %s182, 1
          %s832 = scalar_lea.sflag [#allocation4], %s831
          %s833 = sand.u32 %s182, 1
          %s834 = smul.addr %s833, 16
          %s835 = scalar_lea.vmem [#allocation3], %s834
          %836 = dma.done %s832, 256
        $region98: #{tpu_custom_call.1} parent=93 // pred_fallthru
          _
      $region94: #{tpu_custom_call.1} parent=5 // pred_fallthru
        _
    $region6: #{tpu_custom_call.1} parent=1 // loop_footer
      %s20 = sadd.s32 1, %s16
    $region7: #{tpu_custom_call.1} parent=1 // loop_footer_branch
      %15 = sbr.rel target = $region3
    $region8: #{tpu_custom_call.1} parent=1 // loop_exit
      _
    %837 = vsyncpa [#allocation4], 1
    %s838 = scalar_lea.sflag [#allocation4], 1
    %839 = vsyncpa %s838, 1

</llo_original>
